<compile_context>
chip_gen: v6e
topology: v6e:2x2x1
jax: 0.10.0
libtpu: 0.0.40
codegen_flags: <defaults>
</compile_context>

<pallas_src>
import jax
import jax.numpy as jnp
from jax.experimental import pallas as pl
from jax.experimental.pallas import tpu as pltpu

IN_FEATURES = 28 * 28   # 784
OUT_FEATURES = 10
DEFAULT_BLOCK_B = 2048  # f32 streamed x: 2 x 2048 x 784 x 4B ~= 12.9 MiB of
                        # double-buffered input -> under the default scoped
                        # VMEM on v5e (16 MiB), v6e (32 MiB) and v7x (32 MiB).


def _round_up(n, m):
    return ((n + m - 1) // m) * m


def fcnet_kernel(x_ref, w_ref, b_ref, out_ref):
    # x_ref:  (TB, 784)  f32  VMEM tile of the batch (streamed, native dtype)
    # w_ref:  (784, 10)  bf16 VMEM (resident, pre-transposed -> x @ w)
    # b_ref:  (1, 10)    f32  VMEM (resident)
    # out_ref:(TB, 10)   f32  VMEM tile
    # Cast to bf16 in-kernel (VPU) right before the MXU matmul; accumulate f32.
    x = x_ref[...].astype(jnp.bfloat16)
    logits = jnp.dot(x, w_ref[...], preferred_element_type=jnp.float32) + b_ref[...]

    # Numerically stable log_softmax along dim=1, all in f32.
    m = jnp.max(logits, axis=-1, keepdims=True)
    shifted = logits - m
    lse = jnp.log(jnp.sum(jnp.exp(shifted), axis=-1, keepdims=True))
    out_ref[...] = (shifted - lse).astype(out_ref.dtype)


def prepare_fcnet_params(weight, bias):
    """One-off param prep (hoist out of the per-call hot path).

    weight: (10, 784) f32  ->  (784, 10) bf16 so the kernel is a plain x @ W.
    bias:   (10,)     f32  ->  (1, 10)   f32.
    """
    w_t = weight.T.astype(jnp.bfloat16)
    b2 = bias.reshape(1, OUT_FEATURES).astype(jnp.float32)
    return w_t, b2


def fcnet_forward(x_nchw, w_t, b2, block_b=DEFAULT_BLOCK_B):
    """x_nchw: (B, 1, 28, 28) f32; w_t: (784, 10) bf16; b2: (1, 10) f32.

    Returns (B, 10) f32 log-probabilities.
    """
    B = x_nchw.shape[0]

    # torch.flatten(x, 1): row-major reshape, free (no copy). Stream native f32.
    x_flat = x_nchw.reshape(B, IN_FEATURES)

    # Batch tile: multiple of 16 rows, capped by block_b, and additionally
    # capped so the grid keeps >= ~4 steps for moderate B (keeps both v7x
    # TensorCores busy via the "parallel" batch axis).
    tb = min(block_b, _round_up(pl.cdiv(B, 4), 16))
    grid = (pl.cdiv(B, tb),)  # ragged trailing block handled by Pallas masking

    out = pl.pallas_call(
        fcnet_kernel,
        out_shape=jax.ShapeDtypeStruct((B, OUT_FEATURES), jnp.float32),
        grid=grid,
        in_specs=[
            # Streamed batch tile: double-buffered DMA overlaps compute.
            pl.BlockSpec((tb, IN_FEATURES), lambda i: (i, 0)),
            # Weights / bias: same block every step -> stay resident in VMEM.
            pl.BlockSpec((IN_FEATURES, OUT_FEATURES), lambda i: (0, 0)),
            pl.BlockSpec((1, OUT_FEATURES), lambda i: (0, 0)),
        ],
        out_specs=pl.BlockSpec((tb, OUT_FEATURES), lambda i: (i, 0)),
        compiler_params=pltpu.CompilerParams(
            # Batch axis is independent -> shard across the 2 TCs on v7x.
            dimension_semantics=("parallel",),
        ),
    )(x_flat, w_t, b2)

    return out


if __name__ == "__main__":
    key = jax.random.PRNGKey(0)
    kx, kw, kb = jax.random.split(key, 3)

    B = 8
    x = jax.random.normal(kx, (B, 1, 28, 28), dtype=jnp.float32)

    # Deterministic Linear init, mimicking PyTorch's U(-1/sqrt(fan_in), 1/sqrt(fan_in)).
    bound = 1.0 / (IN_FEATURES ** 0.5)
    weight = jax.random.uniform(kw, (OUT_FEATURES, IN_FEATURES),
                                minval=-bound, maxval=bound, dtype=jnp.float32)
    bias = jax.random.uniform(kb, (OUT_FEATURES,),
                              minval=-bound, maxval=bound, dtype=jnp.float32)

    # Param prep done once (outside the hot path).
    w_t, b2 = prepare_fcnet_params(weight, bias)

    out = fcnet_forward(x, w_t, b2)
    out = jax.block_until_ready(out)
    assert out.shape == (B, OUT_FEATURES)
    assert bool(jnp.all(jnp.isfinite(out)))

    x_flat = x.reshape(B, -1)

    # Reference 1: same in-kernel math (bf16 operands, f32 accumulate) -> tight tol.
    logits_bf16 = jnp.dot(x_flat.astype(jnp.bfloat16), weight.T.astype(jnp.bfloat16),
                          preferred_element_type=jnp.float32) + bias
    ref_bf16 = jax.nn.log_softmax(logits_bf16, axis=1)
    assert jnp.allclose(out, ref_bf16, atol=2e-3, rtol=2e-3)

    # Reference 2: full-f32 PyTorch-equivalent forward (loose tol due to bf16 MXU operands).
    logits_f32 = x_flat @ weight.T + bias
    ref_f32 = jax.nn.log_softmax(logits_f32, axis=1)
    assert jnp.allclose(out, ref_f32, atol=3e-2, rtol=3e-2)

    print("KERNEL_OK")
</pallas_src>

<mosaic_0001>
module attributes {stable_mosaic.version = 11 : i64} {
  func.func @fcnet_kernel(%arg0: i32, %arg1: memref<16x784xf32, #tpu.memory_space<vmem>>, %arg2: memref<784x10xbf16, #tpu.memory_space<vmem>>, %arg3: memref<1x10xf32, #tpu.memory_space<vmem>>, %arg4: memref<16x10xf32, #tpu.memory_space<vmem>>) attributes {dimension_semantics = [#tpu.dimension_semantics<parallel>], iteration_bounds = array<i64: 1>, scalar_prefetch = 0 : i64, scratch_operands = 0 : i64, tpu.core_type = #tpu.core_type<tc>, window_params = [{transform_indices = @transform_0, window_bounds = array<i64: 16, 784>}, {pipeline_mode = #tpu.pipeline_mode<synchronous>, transform_indices = @transform_1, window_bounds = array<i64: 784, 10>}, {pipeline_mode = #tpu.pipeline_mode<synchronous>, transform_indices = @transform_2, window_bounds = array<i64: 1, 10>}, {transform_indices = @transform_3, window_bounds = array<i64: 16, 10>}]} {
    %c0 = arith.constant 0 : index
    %c0_0 = arith.constant 0 : index
    %0 = vector.load %arg1[%c0, %c0_0] : memref<16x784xf32, #tpu.memory_space<vmem>>, vector<16x784xf32>
    %1 = arith.truncf %0 : vector<16x784xf32> to vector<16x784xbf16>
    %c0_1 = arith.constant 0 : index
    %c0_2 = arith.constant 0 : index
    %2 = vector.load %arg2[%c0_1, %c0_2] : memref<784x10xbf16, #tpu.memory_space<vmem>>, vector<784x10xbf16>
    %cst = arith.constant dense<0.000000e+00> : vector<16x10xf32>
    %3 = tpu.matmul %1, %2, %cst {dimension_numbers = #tpu.dot_dimension_numbers<[1], [0], [0], [1], [0, 0, 1, 1], [], []>} : vector<16x784xbf16>, vector<784x10xbf16>, vector<16x10xf32> -> vector<16x10xf32>
    %c0_3 = arith.constant 0 : index
    %c0_4 = arith.constant 0 : index
    %4 = vector.load %arg3[%c0_3, %c0_4] : memref<1x10xf32, #tpu.memory_space<vmem>>, vector<1x10xf32>
    %5 = vector.broadcast %4 : vector<1x10xf32> to vector<16x10xf32>
    %6 = arith.addf %3, %5 : vector<16x10xf32>
    %cst_5 = arith.constant dense<0xFF800000> : vector<16xf32>
    %7 = vector.multi_reduction <maximumf>, %6, %cst_5 [1] : vector<16x10xf32> to vector<16xf32>
    %8 = vector.shape_cast %7 : vector<16xf32> to vector<16x1xf32>
    %9 = vector.broadcast %8 : vector<16x1xf32> to vector<16x10xf32>
    %10 = arith.subf %6, %9 : vector<16x10xf32>
    %11 = math.exp %10 : vector<16x10xf32>
    %cst_6 = arith.constant dense<0.000000e+00> : vector<16xf32>
    %12 = vector.multi_reduction <add>, %11, %cst_6 [1] : vector<16x10xf32> to vector<16xf32>
    %13 = vector.shape_cast %12 : vector<16xf32> to vector<16x1xf32>
    %14 = math.log %13 : vector<16x1xf32>
    %15 = vector.broadcast %14 : vector<16x1xf32> to vector<16x10xf32>
    %16 = arith.subf %10, %15 : vector<16x10xf32>
    %c0_7 = arith.constant 0 : index
    %c0_8 = arith.constant 0 : index
    %17 = vector.load %arg4[%c0_7, %c0_8] : memref<16x10xf32, #tpu.memory_space<vmem>>, vector<16x10xf32>
    tpu.vector_store %arg4[%c0_7, %c0_8], %16 {strides = array<i32>} : memref<16x10xf32, #tpu.memory_space<vmem>>, vector<16x10xf32>,
    return
  }
  func.func @transform_0(%arg0: i32) -> (i32, i32) {
    %c0_i32 = arith.constant 0 : i32
    %c0_i32_0 = arith.constant 0 : i32
    return %arg0, %c0_i32 : i32, i32
  }
  func.func @transform_1(%arg0: i32) -> (i32, i32) {
    %c0_i32 = arith.constant 0 : i32
    %c0_i32_0 = arith.constant 0 : i32
    %c0_i32_1 = arith.constant 0 : i32
    return %c0_i32, %c0_i32_0 : i32, i32
  }
  func.func @transform_2(%arg0: i32) -> (i32, i32) {
    %c0_i32 = arith.constant 0 : i32
    %c0_i32_0 = arith.constant 0 : i32
    %c0_i32_1 = arith.constant 0 : i32
    return %c0_i32, %c0_i32_0 : i32, i32
  }
  func.func @transform_3(%arg0: i32) -> (i32, i32) {
    %c0_i32 = arith.constant 0 : i32
    %c0_i32_0 = arith.constant 0 : i32
    return %arg0, %c0_i32 : i32, i32
  }
}

</mosaic_0001>

<llo_original>
// kernel: tpu_custom_call.1
$region0: #{tpu_custom_call.1}
  #allocation0 [shape = 'u32[]', space=smem, size = 0x4, offset = 0x4, fixed_abs, tag = 'smem constant byte address 0x4 - core index']
  #allocation1 [shape = 'u32[144,128]{1,0:T(1,128)}', space=vmem, size = 0x12000, scoped, tag = 'internal scratch']
  %s0 = inlined_call_operand.vmem [shape: f32[8,784], index: 0, kind: input, shape index: {}]
  %s1 = inlined_call_operand.vmem [shape: bf16[784,10], index: 1, kind: input, shape index: {}]
  %s2 = inlined_call_operand.vmem [shape: f32[1,10], index: 2, kind: input, shape index: {}]
  %s3 = inlined_call_operand.hbm [shape: f32[8,10], index: 3, kind: output, shape index: {}]
  %s4 = sld [smem:[#allocation0]]
  $region22: #{tpu_custom_call.1} parent=0
    _
  %s6 = ssub.s32 1, %s4
  %s7 = scalar_select 0, %s6, %s4
  $region1: #{tpu_custom_call.1} parent=0
    #allocation2 [shape = 'u8[8192]{0}', space=vmem, size = 0x2000, scoped, tag = 'output window, operand 0, single buffered']
    #allocation3 [shape = 's32[1]{0}', space=sflag, size = 0x4, scoped, tag = 'scoped memory for tpu_custom_call.1']
    %8 = vsyncpa [#allocation3], 0
    // Predicated region
    $region2: #{tpu_custom_call.1} parent=1 // pred_check
      _
    $region3: #{tpu_custom_call.1} parent=1 // pred_check_branch
      %10 = sbr.rel (0) target = $region5
    $region4: #{tpu_custom_call.1} parent=1 // pred_region
      _
    $region5: #{tpu_custom_call.1} parent=1 // pred_fallthru
      _
    // Predicated region
    $region6: #{tpu_custom_call.1} parent=1 // pred_check
      _
    $region7: #{tpu_custom_call.1} parent=1 // pred_check_branch
      %12 = sbr.rel (0) target = $region9
    $region8: #{tpu_custom_call.1} parent=1 // pred_region
      _
    $region9: #{tpu_custom_call.1} parent=1 // pred_fallthru
      _
    // Predicated region
    $region10: #{tpu_custom_call.1} parent=1 // pred_check
      _
    $region11: #{tpu_custom_call.1} parent=1 // pred_check_branch
      %14 = sbr.rel (0) target = $region13
    $region12: #{tpu_custom_call.1} parent=1 // pred_region
      _
    $region13: #{tpu_custom_call.1} parent=1 // pred_fallthru
      _
    %v16 = vld [vmem:[%s0] sm:$0xff]
    %v17 = vld [vmem:[%s0 + $0x8] sm:$0xff]
    %v18 = vld [vmem:[%s0 + $0x10] sm:$0xff]
    %v19 = vld [vmem:[%s0 + $0x18] sm:$0xff]
    %v20 = vld [vmem:[%s0 + $0x20] sm:$0xff]
    %v21 = vld [vmem:[%s0 + $0x28] sm:$0xff]
    %v22 = vld [vmem:[%s0 + $0x30] sm:$0xff]
    %v23 = vld [vmem:[%s0 + $0x38] sm:$0xff]
    %v24 = vld [vmem:[%s0 + $0x40] sm:$0xff]
    %v25 = vld [vmem:[%s0 + $0x48] sm:$0xff]
    %v26 = vld [vmem:[%s0 + $0x50] sm:$0xff]
    %v27 = vld [vmem:[%s0 + $0x58] sm:$0xff]
    %v28 = vld [vmem:[%s0 + $0x60] sm:$0xff]
    %v29 = vld [vmem:[%s0 + $0x68] sm:$0xff]
    %v30 = vpack.c.bf16 %v23, %v16
    %v31 = vpack.c.bf16 %v24, %v17
    %v32 = vpack.c.bf16 %v25, %v18
    %v33 = vpack.c.bf16 %v26, %v19
    %v34 = vpack.c.bf16 %v27, %v20
    %v35 = vpack.c.bf16 %v28, %v21
    %v36 = vpack.c.bf16 %v29, %v22
    %v37 = vld [vmem:[%s1] sm:$0xf]
    %v38 = vld [vmem:[%s1 + $0x4] sm:$0xf]
    %v39 = vld [vmem:[%s1 + $0x8] sm:$0xf]
    %v40 = vld [vmem:[%s1 + $0xc] sm:$0xf]
    %v41 = vld [vmem:[%s1 + $0x10] sm:$0xf]
    %v42 = vld [vmem:[%s1 + $0x14] sm:$0xf]
    %v43 = vld [vmem:[%s1 + $0x18] sm:$0xf]
    %v44 = vld [vmem:[%s1 + $0x1c] sm:$0xf]
    %v45 = vld [vmem:[%s1 + $0x20] sm:$0xf]
    %v46 = vld [vmem:[%s1 + $0x24] sm:$0xf]
    %v47 = vld [vmem:[%s1 + $0x28] sm:$0xf]
    %v48 = vld [vmem:[%s1 + $0x2c] sm:$0xf]
    %v49 = vld [vmem:[%s1 + $0x30] sm:$0xf]
    %v50 = vld [vmem:[%s1 + $0x34] sm:$0xf]
    %v51 = vld [vmem:[%s1 + $0x38] sm:$0xf]
    %v52 = vld [vmem:[%s1 + $0x3c] sm:$0xf]
    %v53 = vld [vmem:[%s1 + $0x40] sm:$0xf]
    %v54 = vld [vmem:[%s1 + $0x44] sm:$0xf]
    %v55 = vld [vmem:[%s1 + $0x48] sm:$0xf]
    %v56 = vld [vmem:[%s1 + $0x4c] sm:$0xf]
    %v57 = vld [vmem:[%s1 + $0x50] sm:$0xf]
    %v58 = vld [vmem:[%s1 + $0x54] sm:$0xf]
    %v59 = vld [vmem:[%s1 + $0x58] sm:$0xf]
    %v60 = vld [vmem:[%s1 + $0x5c] sm:$0xf]
    %v61 = vld [vmem:[%s1 + $0x60] sm:$0xf]
    %v62 = vld [vmem:[%s1 + $0x64] sm:$0xf]
    %v63 = vld [vmem:[%s1 + $0x68] sm:$0xf]
    %v64 = vld [vmem:[%s1 + $0x6c] sm:$0xf]
    %v65 = vld [vmem:[%s1 + $0x70] sm:$0xf]
    %v66 = vld [vmem:[%s1 + $0x74] sm:$0xf]
    %v67 = vld [vmem:[%s1 + $0x78] sm:$0xf]
    %v68 = vld [vmem:[%s1 + $0x7c] sm:$0xf]
    %v69 = vld [vmem:[%s1 + $0x80] sm:$0xf]
    %v70 = vld [vmem:[%s1 + $0x84] sm:$0xf]
    %v71 = vld [vmem:[%s1 + $0x88] sm:$0xf]
    %v72 = vld [vmem:[%s1 + $0x8c] sm:$0xf]
    %v73 = vld [vmem:[%s1 + $0x90] sm:$0xf]
    %v74 = vld [vmem:[%s1 + $0x94] sm:$0xf]
    %v75 = vld [vmem:[%s1 + $0x98] sm:$0xf]
    %v76 = vld [vmem:[%s1 + $0x9c] sm:$0xf]
    %v77 = vld [vmem:[%s1 + $0xa0] sm:$0xf]
    %v78 = vld [vmem:[%s1 + $0xa4] sm:$0xf]
    %v79 = vld [vmem:[%s1 + $0xa8] sm:$0xf]
    %v80 = vld [vmem:[%s1 + $0xac] sm:$0xf]
    %v81 = vld [vmem:[%s1 + $0xb0] sm:$0xf]
    %v82 = vld [vmem:[%s1 + $0xb4] sm:$0xf]
    %v83 = vld [vmem:[%s1 + $0xb8] sm:$0xf]
    %v84 = vld [vmem:[%s1 + $0xbc] sm:$0xf]
    %v85 = vld [vmem:[%s1 + $0xc0] sm:$0xf]
    %v86 = vld [vmem:[%s1 + $0xc4] sm:$0xf]
    %v87 = vld [vmem:[%s1 + $0xc8] sm:$0xf]
    %v88 = vld [vmem:[%s1 + $0xcc] sm:$0xf]
    %v89 = vld [vmem:[%s1 + $0xd0] sm:$0xf]
    %v90 = vld [vmem:[%s1 + $0xd4] sm:$0xf]
    %v91 = vld [vmem:[%s1 + $0xd8] sm:$0xf]
    %v92 = vld [vmem:[%s1 + $0xdc] sm:$0xf]
    %v93 = vld [vmem:[%s1 + $0xe0] sm:$0xf]
    %v94 = vld [vmem:[%s1 + $0xe4] sm:$0xf]
    %v95 = vld [vmem:[%s1 + $0xe8] sm:$0xf]
    %v96 = vld [vmem:[%s1 + $0xec] sm:$0xf]
    %v97 = vld [vmem:[%s1 + $0xf0] sm:$0xf]
    %v98 = vld [vmem:[%s1 + $0xf4] sm:$0xf]
    %v99 = vld [vmem:[%s1 + $0xf8] sm:$0xf]
    %v100 = vld [vmem:[%s1 + $0xfc] sm:$0xf]
    %v101 = vld [vmem:[%s1 + $0x100] sm:$0xf]
    %v102 = vld [vmem:[%s1 + $0x104] sm:$0xf]
    %v103 = vld [vmem:[%s1 + $0x108] sm:$0xf]
    %v104 = vld [vmem:[%s1 + $0x10c] sm:$0xf]
    %v105 = vld [vmem:[%s1 + $0x110] sm:$0xf]
    %v106 = vld [vmem:[%s1 + $0x114] sm:$0xf]
    %v107 = vld [vmem:[%s1 + $0x118] sm:$0xf]
    %v108 = vld [vmem:[%s1 + $0x11c] sm:$0xf]
    %v109 = vld [vmem:[%s1 + $0x120] sm:$0xf]
    %v110 = vld [vmem:[%s1 + $0x124] sm:$0xf]
    %v111 = vld [vmem:[%s1 + $0x128] sm:$0xf]
    %v112 = vld [vmem:[%s1 + $0x12c] sm:$0xf]
    %v113 = vld [vmem:[%s1 + $0x130] sm:$0xf]
    %v114 = vld [vmem:[%s1 + $0x134] sm:$0xf]
    %v115 = vld [vmem:[%s1 + $0x138] sm:$0xf]
    %v116 = vld [vmem:[%s1 + $0x13c] sm:$0xf]
    %v117 = vld [vmem:[%s1 + $0x140] sm:$0xf]
    %v118 = vld [vmem:[%s1 + $0x144] sm:$0xf]
    %v119 = vld [vmem:[%s1 + $0x148] sm:$0xf]
    %v120 = vld [vmem:[%s1 + $0x14c] sm:$0xf]
    %v121 = vld [vmem:[%s1 + $0x150] sm:$0xf]
    %v122 = vld [vmem:[%s1 + $0x154] sm:$0xf]
    %v123 = vld [vmem:[%s1 + $0x158] sm:$0xf]
    %v124 = vld [vmem:[%s1 + $0x15c] sm:$0xf]
    %v125 = vld [vmem:[%s1 + $0x160] sm:$0xf]
    %v126 = vld [vmem:[%s1 + $0x164] sm:$0xf]
    %v127 = vld [vmem:[%s1 + $0x168] sm:$0xf]
    %v128 = vld [vmem:[%s1 + $0x16c] sm:$0xf]
    %v129 = vld [vmem:[%s1 + $0x170] sm:$0xf]
    %v130 = vld [vmem:[%s1 + $0x174] sm:$0xf]
    %v131 = vld [vmem:[%s1 + $0x178] sm:$0xf]
    %v132 = vld [vmem:[%s1 + $0x17c] sm:$0xf]
    %v133 = vld [vmem:[%s1 + $0x180] sm:$0xf]
    %v134 = vld [vmem:[%s1 + $0x184] sm:$0xf]
    %v135 = vld [vmem:[%s2] sm:$0x1]
    %v137 = vlaneseq
    %v138 = vshrl.u32 %v137, 7
    %v139 = vsub.s32 0, %v138
    %v140 = vrot.slane %v135, %v139
    %v240 = vunpack.c.l.b16 %v37
    %v241 = vunpack.c.l.b16 %v38
    %v242 = vunpack.c.l.b16 %v39
    %v243 = vunpack.c.l.b16 %v40
    %v244 = vunpack.c.l.b16 %v41
    %v245 = vunpack.c.l.b16 %v42
    %v246 = vunpack.c.l.b16 %v43
    %v247 = vunpack.c.l.b16 %v44
    %v248 = vunpack.c.l.b16 %v45
    %v249 = vunpack.c.l.b16 %v46
    %v250 = vunpack.c.l.b16 %v47
    %v251 = vunpack.c.l.b16 %v48
    %v252 = vunpack.c.l.b16 %v49
    %v253 = vunpack.c.l.b16 %v50
    %v254 = vunpack.c.l.b16 %v51
    %v255 = vunpack.c.l.b16 %v52
    %v256 = vunpack.c.l.b16 %v53
    %v257 = vunpack.c.l.b16 %v54
    %v258 = vunpack.c.l.b16 %v55
    %v259 = vunpack.c.l.b16 %v56
    %v260 = vunpack.c.l.b16 %v57
    %v261 = vunpack.c.l.b16 %v58
    %v262 = vunpack.c.l.b16 %v59
    %v263 = vunpack.c.l.b16 %v60
    %v264 = vunpack.c.l.b16 %v61
    %v265 = vunpack.c.l.b16 %v62
    %v266 = vunpack.c.l.b16 %v63
    %v267 = vunpack.c.l.b16 %v64
    %v268 = vunpack.c.l.b16 %v65
    %v269 = vunpack.c.l.b16 %v66
    %v270 = vunpack.c.l.b16 %v67
    %v271 = vunpack.c.l.b16 %v68
    %v272 = vunpack.c.l.b16 %v69
    %v273 = vunpack.c.l.b16 %v70
    %v274 = vunpack.c.l.b16 %v71
    %v275 = vunpack.c.l.b16 %v72
    %v276 = vunpack.c.l.b16 %v73
    %v277 = vunpack.c.l.b16 %v74
    %v278 = vunpack.c.l.b16 %v75
    %v279 = vunpack.c.l.b16 %v76
    %v280 = vunpack.c.l.b16 %v77
    %v281 = vunpack.c.l.b16 %v78
    %v282 = vunpack.c.l.b16 %v79
    %v283 = vunpack.c.l.b16 %v80
    %v284 = vunpack.c.l.b16 %v81
    %v285 = vunpack.c.l.b16 %v82
    %v286 = vunpack.c.l.b16 %v83
    %v287 = vunpack.c.l.b16 %v84
    %v288 = vunpack.c.l.b16 %v85
    %v289 = vunpack.c.l.b16 %v86
    %v290 = vunpack.c.l.b16 %v87
    %v291 = vunpack.c.l.b16 %v88
    %v292 = vunpack.c.l.b16 %v89
    %v293 = vunpack.c.l.b16 %v90
    %v294 = vunpack.c.l.b16 %v91
    %v295 = vunpack.c.l.b16 %v92
    %v296 = vunpack.c.l.b16 %v93
    %v297 = vunpack.c.l.b16 %v94
    %v298 = vunpack.c.l.b16 %v95
    %v299 = vunpack.c.l.b16 %v96
    %v300 = vunpack.c.l.b16 %v97
    %v301 = vunpack.c.l.b16 %v98
    %v302 = vunpack.c.l.b16 %v99
    %v303 = vunpack.c.l.b16 %v100
    %v304 = vunpack.c.l.b16 %v101
    %v305 = vunpack.c.l.b16 %v102
    %v306 = vunpack.c.l.b16 %v103
    %v307 = vunpack.c.l.b16 %v104
    %v308 = vunpack.c.l.b16 %v105
    %v309 = vunpack.c.l.b16 %v106
    %v310 = vunpack.c.l.b16 %v107
    %v311 = vunpack.c.l.b16 %v108
    %v312 = vunpack.c.l.b16 %v109
    %v313 = vunpack.c.l.b16 %v110
    %v314 = vunpack.c.l.b16 %v111
    %v315 = vunpack.c.l.b16 %v112
    %v316 = vunpack.c.l.b16 %v113
    %v317 = vunpack.c.l.b16 %v114
    %v318 = vunpack.c.l.b16 %v115
    %v319 = vunpack.c.l.b16 %v116
    %v320 = vunpack.c.l.b16 %v117
    %v321 = vunpack.c.l.b16 %v118
    %v322 = vunpack.c.l.b16 %v119
    %v323 = vunpack.c.l.b16 %v120
    %v324 = vunpack.c.l.b16 %v121
    %v325 = vunpack.c.l.b16 %v122
    %v326 = vunpack.c.l.b16 %v123
    %v327 = vunpack.c.l.b16 %v124
    %v328 = vunpack.c.l.b16 %v125
    %v329 = vunpack.c.l.b16 %v126
    %v330 = vunpack.c.l.b16 %v127
    %v331 = vunpack.c.l.b16 %v128
    %v332 = vunpack.c.l.b16 %v129
    %v333 = vunpack.c.l.b16 %v130
    %v334 = vunpack.c.l.b16 %v131
    %v335 = vunpack.c.l.b16 %v132
    %v336 = vunpack.c.l.b16 %v133
    %v337 = vunpack.c.l.b16 %v134
    %v338 = vpack.c.b16 %v241, %v240
    %v339 = vpack.c.b16 %v243, %v242
    %v340 = vpack.c.b16 %v245, %v244
    %v341 = vpack.c.b16 %v247, %v246
    %v342 = vpack.c.b16 %v249, %v248
    %v343 = vpack.c.b16 %v251, %v250
    %v344 = vpack.c.b16 %v253, %v252
    %v345 = vpack.c.b16 %v255, %v254
    %v346 = vpack.c.b16 %v257, %v256
    %v347 = vpack.c.b16 %v259, %v258
    %v348 = vpack.c.b16 %v261, %v260
    %v349 = vpack.c.b16 %v263, %v262
    %v350 = vpack.c.b16 %v265, %v264
    %v351 = vpack.c.b16 %v267, %v266
    %v352 = vpack.c.b16 %v269, %v268
    %v353 = vpack.c.b16 %v271, %v270
    %v354 = vpack.c.b16 %v273, %v272
    %v355 = vpack.c.b16 %v275, %v274
    %v356 = vpack.c.b16 %v277, %v276
    %v357 = vpack.c.b16 %v279, %v278
    %v358 = vpack.c.b16 %v281, %v280
    %v359 = vpack.c.b16 %v283, %v282
    %v360 = vpack.c.b16 %v285, %v284
    %v361 = vpack.c.b16 %v287, %v286
    %v362 = vpack.c.b16 %v289, %v288
    %v363 = vpack.c.b16 %v291, %v290
    %v364 = vpack.c.b16 %v293, %v292
    %v365 = vpack.c.b16 %v295, %v294
    %v366 = vpack.c.b16 %v297, %v296
    %v367 = vpack.c.b16 %v299, %v298
    %v368 = vpack.c.b16 %v301, %v300
    %v369 = vpack.c.b16 %v303, %v302
    %v370 = vpack.c.b16 %v305, %v304
    %v371 = vpack.c.b16 %v307, %v306
    %v372 = vpack.c.b16 %v309, %v308
    %v373 = vpack.c.b16 %v311, %v310
    %v374 = vpack.c.b16 %v313, %v312
    %v375 = vpack.c.b16 %v315, %v314
    %v376 = vpack.c.b16 %v317, %v316
    %v377 = vpack.c.b16 %v319, %v318
    %v378 = vpack.c.b16 %v321, %v320
    %v379 = vpack.c.b16 %v323, %v322
    %v380 = vpack.c.b16 %v325, %v324
    %v381 = vpack.c.b16 %v327, %v326
    %v382 = vpack.c.b16 %v329, %v328
    %v383 = vpack.c.b16 %v331, %v330
    %v384 = vpack.c.b16 %v333, %v332
    %v385 = vpack.c.b16 %v335, %v334
    %v386 = vpack.c.b16 %v337, %v336
    %vm436 = vcmask 130048
    %v438 = vsel %vm436, %v36, 0
    %440 = vmatprep.subr.bf16.mxu0 0
    %441 = vmatpush1.bf16.msra.mxu0 %v345
    %442 = vmatprep.subr.bf16.mxu0 0
    %443 = vmatpush1.bf16.msra.mxu0 %v344
    %444 = vmatprep.subr.bf16.mxu0 0
    %445 = vmatpush1.bf16.msra.mxu0 %v343
    %446 = vmatprep.subr.bf16.mxu0 0
    %447 = vmatpush1.bf16.msra.mxu0 %v342
    %448 = vmatprep.subr.bf16.mxu0 0
    %449 = vmatpush1.bf16.msra.mxu0 %v341
    %450 = vmatprep.subr.bf16.mxu0 0
    %451 = vmatpush1.bf16.msra.mxu0 %v340
    %452 = vmatprep.subr.bf16.mxu0 0
    %453 = vmatpush1.bf16.msra.mxu0 %v339
    %454 = vmatprep.subr.bf16.mxu0 0
    %455 = vmatpush1.bf16.msra.mxu0 %v338
    %456 = vmatprep.subr.bf16.mxu0 0
    %457 = vmatpush2.bf16.msra.mxu0 %v353
    %458 = vmatprep.subr.bf16.mxu0 0
    %459 = vmatpush2.bf16.msra.mxu0 %v352
    %460 = vmatprep.subr.bf16.mxu0 0
    %461 = vmatpush2.bf16.msra.mxu0 %v351
    %462 = vmatprep.subr.bf16.mxu0 0
    %463 = vmatpush2.bf16.msra.mxu0 %v350
    %464 = vmatprep.subr.bf16.mxu0 0
    %465 = vmatpush2.bf16.msra.mxu0 %v349
    %466 = vmatprep.subr.bf16.mxu0 0
    %467 = vmatpush2.bf16.msra.mxu0 %v348
    %468 = vmatprep.subr.bf16.mxu0 0
    %469 = vmatpush2.bf16.msra.mxu0 %v347
    %470 = vmatprep.subr.bf16.mxu0 0
    %471 = vmatpush2.bf16.msra.mxu0 %v346
    %472 = vmatprep.mubr.bf16.mxu0 %v31
    %473 = vmatmul.mubr.bf16.gmra.mxu0 %v30
    %v474 = vpop.f32.mrf.mxu0
    %v475 = vadd.f32 %v140, %v474
    %v476 = vpop.f32.mrf.mxu0
    %v477 = vpop.f32.mrf.mxu0
    %v478 = vadd.f32 %v140, %v477
    %v479 = vpop.f32.mrf.mxu0
    %480 = vdwg.mxu0
    %481 = vmatprep.subr.bf16.mxu0 0
    %482 = vmatpush1.bf16.msra.mxu0 %v361
    %483 = vmatprep.subr.bf16.mxu0 0
    %484 = vmatpush1.bf16.msra.mxu0 %v360
    %485 = vmatprep.subr.bf16.mxu0 0
    %486 = vmatpush1.bf16.msra.mxu0 %v359
    %487 = vmatprep.subr.bf16.mxu0 0
    %488 = vmatpush1.bf16.msra.mxu0 %v358
    %489 = vmatprep.subr.bf16.mxu0 0
    %490 = vmatpush1.bf16.msra.mxu0 %v357
    %491 = vmatprep.subr.bf16.mxu0 0
    %492 = vmatpush1.bf16.msra.mxu0 %v356
    %493 = vmatprep.subr.bf16.mxu0 0
    %494 = vmatpush1.bf16.msra.mxu0 %v355
    %495 = vmatprep.subr.bf16.mxu0 0
    %496 = vmatpush1.bf16.msra.mxu0 %v354
    %497 = vmatprep.subr.bf16.mxu0 0
    %498 = vmatpush2.bf16.msra.mxu0 %v369
    %499 = vmatprep.subr.bf16.mxu0 0
    %500 = vmatpush2.bf16.msra.mxu0 %v368
    %501 = vmatprep.subr.bf16.mxu0 0
    %502 = vmatpush2.bf16.msra.mxu0 %v367
    %503 = vmatprep.subr.bf16.mxu0 0
    %504 = vmatpush2.bf16.msra.mxu0 %v366
    %505 = vmatprep.subr.bf16.mxu0 0
    %506 = vmatpush2.bf16.msra.mxu0 %v365
    %507 = vmatprep.subr.bf16.mxu0 0
    %508 = vmatpush2.bf16.msra.mxu0 %v364
    %509 = vmatprep.subr.bf16.mxu0 0
    %510 = vmatpush2.bf16.msra.mxu0 %v363
    %511 = vmatprep.subr.bf16.mxu0 0
    %512 = vmatpush2.bf16.msra.mxu0 %v362
    %513 = vmatprep.mubr.bf16.mxu0 %v33
    %514 = vmatmul.mubr.bf16.gmra.mxu0 %v32
    %v515 = vpop.f32.mrf.mxu0
    %v516 = vadd.f32 %v475, %v515
    %v517 = vpop.f32.mrf.mxu0
    %v518 = vpop.f32.mrf.mxu0
    %v519 = vadd.f32 %v478, %v518
    %v520 = vpop.f32.mrf.mxu0
    %521 = vdwg.mxu0
    %522 = vmatprep.subr.bf16.mxu0 0
    %523 = vmatpush1.bf16.msra.mxu0 %v377
    %524 = vmatprep.subr.bf16.mxu0 0
    %525 = vmatpush1.bf16.msra.mxu0 %v376
    %526 = vmatprep.subr.bf16.mxu0 0
    %527 = vmatpush1.bf16.msra.mxu0 %v375
    %528 = vmatprep.subr.bf16.mxu0 0
    %529 = vmatpush1.bf16.msra.mxu0 %v374
    %530 = vmatprep.subr.bf16.mxu0 0
    %531 = vmatpush1.bf16.msra.mxu0 %v373
    %532 = vmatprep.subr.bf16.mxu0 0
    %533 = vmatpush1.bf16.msra.mxu0 %v372
    %534 = vmatprep.subr.bf16.mxu0 0
    %535 = vmatpush1.bf16.msra.mxu0 %v371
    %536 = vmatprep.subr.bf16.mxu0 0
    %537 = vmatpush1.bf16.msra.mxu0 %v370
    %538 = vmatprep.subr.bf16.mxu0 0
    %539 = vmatpush2.bf16.msra.mxu0 %v385
    %540 = vmatprep.subr.bf16.mxu0 0
    %541 = vmatpush2.bf16.msra.mxu0 %v384
    %542 = vmatprep.subr.bf16.mxu0 0
    %543 = vmatpush2.bf16.msra.mxu0 %v383
    %544 = vmatprep.subr.bf16.mxu0 0
    %545 = vmatpush2.bf16.msra.mxu0 %v382
    %546 = vmatprep.subr.bf16.mxu0 0
    %547 = vmatpush2.bf16.msra.mxu0 %v381
    %548 = vmatprep.subr.bf16.mxu0 0
    %549 = vmatpush2.bf16.msra.mxu0 %v380
    %550 = vmatprep.subr.bf16.mxu0 0
    %551 = vmatpush2.bf16.msra.mxu0 %v379
    %552 = vmatprep.subr.bf16.mxu0 0
    %553 = vmatpush2.bf16.msra.mxu0 %v378
    %554 = vmatprep.mubr.bf16.mxu0 %v35
    %555 = vmatmul.mubr.bf16.gmra.mxu0 %v34
    %v556 = vpop.f32.mrf.mxu0
    %v557 = vadd.f32 %v516, %v556
    %v558 = vpop.f32.mrf.mxu0
    %v559 = vpop.f32.mrf.mxu0
    %v560 = vadd.f32 %v519, %v559
    %v561 = vpop.f32.mrf.mxu0
    %562 = vdwg.mxu0
    %563 = vmatprep.subr.bf16.mxu0 0
    %564 = vmatpush1.bf16.msra.mxu0 0
    %565 = vmatprep.subr.bf16.mxu0 0
    %566 = vmatpush1.bf16.msra.mxu0 0
    %567 = vmatprep.subr.bf16.mxu0 0
    %568 = vmatpush1.bf16.msra.mxu0 0
    %569 = vmatprep.subr.bf16.mxu0 0
    %570 = vmatpush1.bf16.msra.mxu0 0
    %571 = vmatprep.subr.bf16.mxu0 0
    %572 = vmatpush1.bf16.msra.mxu0 0
    %573 = vmatprep.subr.bf16.mxu0 0
    %574 = vmatpush1.bf16.msra.mxu0 0
    %575 = vmatprep.subr.bf16.mxu0 0
    %576 = vmatpush1.bf16.msra.mxu0 0
    %577 = vmatprep.subr.bf16.mxu0 0
    %578 = vmatpush1.bf16.msra.mxu0 %v386
    %579 = vmatprep.subr.bf16.mxu0 0
    %580 = vmatpush2.bf16.msra.mxu0 0
    %581 = vmatprep.subr.bf16.mxu0 0
    %582 = vmatpush2.bf16.msra.mxu0 0
    %583 = vmatprep.subr.bf16.mxu0 0
    %584 = vmatpush2.bf16.msra.mxu0 0
    %585 = vmatprep.subr.bf16.mxu0 0
    %586 = vmatpush2.bf16.msra.mxu0 0
    %587 = vmatprep.subr.bf16.mxu0 0
    %588 = vmatpush2.bf16.msra.mxu0 0
    %589 = vmatprep.subr.bf16.mxu0 0
    %590 = vmatpush2.bf16.msra.mxu0 0
    %591 = vmatprep.subr.bf16.mxu0 0
    %592 = vmatpush2.bf16.msra.mxu0 0
    %593 = vmatprep.subr.bf16.mxu0 0
    %594 = vmatpush2.bf16.msra.mxu0 0
    %595 = vmatprep.mubr.bf16.mxu0 0
    %596 = vmatmul.mubr.bf16.gmra.mxu0 %v438
    %v597 = vpop.f32.mrf.mxu0
    %v598 = vadd.f32 %v557, %v597
    %v599 = vpop.f32.mrf.mxu0
    %v600 = vpop.f32.mrf.mxu0
    %v601 = vadd.f32 %v560, %v600
    %v602 = vpop.f32.mrf.mxu0
    %603 = vdwg.mxu0
    %vm604 = vcmask 80896
    %v605 = vsel %vm604, %v598, -inf
    %606 = vmax.xlane.f32.xlu0 %v605
    %v607 = vpop.xlane.xlu0 %606
    %v608 = vsel %vm604, %v601, -inf
    %609 = vmax.xlane.f32.xlu0 %v608
    %v610 = vpop.xlane.xlu0 %609
    %v611 = vsub.f32 %v598, %v607
    %v612 = vsub.f32 %v601, %v610
    %v613 = vmul.f32 %v611, 1.442695
    %v614 = vpow.pop %v613
    %v615 = vmul.f32 %v612, 1.442695
    %v616 = vpow.pop %v615
    %v617 = vsel %vm604, %v614, 0.0
    %618 = vadd.xlane.f32.xlu0 %v617
    %v619 = vpop.xlane.xlu0 %618
    %v620 = vsel %vm604, %v616, 0.0
    %621 = vadd.xlane.f32.xlu0 %v620
    %v622 = vpop.xlane.xlu0 %621
    %v623 = vlog2.pop %v619
    %v624 = vmul.f32 %v623, 0.6931472
    %v625 = vlog2.pop %v622
    %v626 = vmul.f32 %v625, 0.6931472
    %v627 = vsub.f32 %v611, %v624
    %v628 = vsub.f32 %v612, %v626
    %629 = vst.msk [vmem:[#allocation2] sm:$0xff] %vm604, %v627
    %630 = vst.msk [vmem:[#allocation2 + $0x8] sm:$0xff] %vm604, %v628
    // Predicated region
    $region14: #{tpu_custom_call.1} parent=1 // pred_check
      _
    $region15: #{tpu_custom_call.1} parent=1 // pred_check_branch
      %632 = sbr.rel (0) target = $region17
    $region16: #{tpu_custom_call.1} parent=1 // pred_region
      %s634 = ssub.s32 256, 128
      %635 = vsyncadd [#allocation3], %s634
      %s636 = sshll.u32 [#allocation2], 4
      %s637 = int_to_ptr.vmem [resolvable:$true] %s636
      %642 = dma.vmem_to_hbm [thread:$0]  %s637, 128, %s3, [#allocation3], 128, 128, 8
    $region17: #{tpu_custom_call.1} parent=1 // pred_fallthru
      _
    // Predicated region
    $region18: #{tpu_custom_call.1} parent=1 // pred_check
      _
    $region19: #{tpu_custom_call.1} parent=1 // pred_check_branch
      %644 = sbr.rel (0) target = $region21
    $region20: #{tpu_custom_call.1} parent=1 // pred_region
      %645 = dma.done [#allocation3], 256
    $region21: #{tpu_custom_call.1} parent=1 // pred_fallthru
      _
    %646 = vsyncpa [#allocation3], 1

</llo_original>
